<compile_context>
chip_gen: v7x
topology: tpu7x:2x2x1
jax: 0.10.0
libtpu: 0.0.40
codegen_flags: <defaults>
</compile_context>

<pallas_src>
import functools

import jax
import jax.numpy as jnp
from jax.experimental import pallas as pl
from jax.experimental.pallas import tpu as pltpu


# ----------------------------------------------------------------------------
# VMEM budgeting / tile-selection helpers
# ----------------------------------------------------------------------------
def _default_vmem_limit_bytes() -> int:
    """Scoped-VMEM limit: ~56 MiB on v7x (64 MiB phys), ~100 MiB on v5e/v6e."""
    try:
        cap = int(pltpu.get_tpu_info().vmem_capacity_bytes)
    except Exception:
        cap = 64 * 1024 * 1024
    return max(min(cap - 8 * 1024 * 1024, 100 * 1024 * 1024), 32 * 1024 * 1024)


_VMEM_LIMIT = _default_vmem_limit_bytes()
_VMEM_BUDGET = int(_VMEM_LIMIT * 0.8)


def _largest_divisor_leq(n, cap, prefer=(256, 128, 8)):
    cap = max(1, min(cap, n))
    divs = [d for d in range(cap, 0, -1) if n % d == 0]
    for align in (*prefer, 1):
        for d in divs:
            if d % align == 0:
                return d
    return 1


def _pick_divisor(n, cap, fits, prefer=(256, 128, 8)):
    """Largest divisor of n (<=cap) satisfying fits(), preferring aligned sizes."""
    cap = max(1, min(cap, n))
    divs = [d for d in range(cap, 0, -1) if n % d == 0]
    for align in (*prefer, 1):
        for d in divs:
            if d % align == 0 and fits(d):
                return d
    return divs[-1]


def _pick_linear_tiles(M, K, N, has_res):
    """Full-K, N-tiled linear: tm from the VMEM budget (intensity lever), tn ~512."""
    tn = _largest_divisor_leq(N, 512)

    def fits(tm):
        need = (2 * tm * K * 2            # x tile, double buffered (bf16)
                + 2 * K * tn * 2          # weight tile, double buffered
                + 2 * tm * tn * 2         # output tile, double buffered
                + (2 * tm * tn * 2 if has_res else 0)
                + tm * tn * 4             # f32 matmul result temporary
                + 4 * K * 2 + 4 * tn * 2)  # ln weight / bias (tiny)
        return need <= _VMEM_BUDGET

    tm = _pick_divisor(M, 1024, fits)
    return tm, tn


def _pick_mlp_tiles(M, H, I):
    """tm first (weight-restream lever), then grow ti within the remaining budget."""
    ti0 = _largest_divisor_leq(I, 256)

    def need(tm, ti):
        return (2 * tm * H * 2        # raw x (norm input + residual) tile, dbuf
                + tm * H * 2          # normalized-x scratch (bf16)
                + tm * H * 4          # f32 down-proj accumulator
                + 2 * tm * H * 2      # output tile, dbuf
                + 2 * 3 * H * ti * 2  # gate/up/down weight tiles, dbuf
                + tm * ti * 8)        # f32 gate + bf16 act/up temporaries

    tm = _pick_divisor(M, 1024, lambda d: need(d, ti0) <= _VMEM_BUDGET)
    ti = _pick_divisor(I, 2048, lambda d: need(tm, d) <= _VMEM_BUDGET)
    return tm, ti


# ----------------------------------------------------------------------------
# Fused linear kernel: y = RMSNorm?(x) @ W (+ bias) (+ residual)
# Full-K blocks, grid over (token tiles, output-column tiles), both parallel.
# ----------------------------------------------------------------------------
def _fused_linear_kernel(*refs, fuse_norm, has_bias, has_res, eps):
    it = iter(refs)
    x_ref = next(it)
    lnw_ref = next(it) if fuse_norm else None
    w_ref = next(it)
    b_ref = next(it) if has_bias else None
    r_ref = next(it) if has_res else None
    o_ref = next(it)

    x = x_ref[...]
    if fuse_norm:
        xf = x.astype(jnp.float32)
        var = jnp.mean(xf * xf, axis=-1, keepdims=True)
        x = (xf * jax.lax.rsqrt(var + eps)).astype(x.dtype) * lnw_ref[...]
    y = jnp.dot(x, w_ref[...], preferred_element_type=jnp.float32)
    if has_bias:
        y = y + b_ref[...].astype(jnp.float32)
    out = y.astype(o_ref.dtype)
    if has_res:
        out = r_ref[...] + out                 # bf16 residual add (torch semantics)
    o_ref[...] = out


def fused_linear(x2d, w_t, *, ln_w=None, bias=None, residual=None, eps=1e-6,
                 tm=None, tn=None):
    M, K = x2d.shape
    Kw, N = w_t.shape
    assert K == Kw
    fuse_norm = ln_w is not None
    has_bias = bias is not None
    has_res = residual is not None

    tm_auto, tn_auto = _pick_linear_tiles(M, K, N, has_res)
    tm = tm or tm_auto
    tn = tn or tn_auto
    assert M % tm == 0 and N % tn == 0

    args = [x2d]
    in_specs = [pl.BlockSpec((tm, K), lambda i, n: (i, 0))]
    if fuse_norm:
        args.append(ln_w.reshape(1, K))
        in_specs.append(pl.BlockSpec((1, K), lambda i, n: (0, 0)))
    args.append(w_t)
    in_specs.append(pl.BlockSpec((K, tn), lambda i, n: (0, n)))
    if has_bias:
        args.append(bias.reshape(1, N))
        in_specs.append(pl.BlockSpec((1, tn), lambda i, n: (0, n)))
    if has_res:
        args.append(residual)
        in_specs.append(pl.BlockSpec((tm, tn), lambda i, n: (i, n)))

    flops = 2 * M * K * N
    bytes_accessed = (M * K + K * N + M * N + (M * N if has_res else 0)) * 2

    return pl.pallas_call(
        functools.partial(_fused_linear_kernel, fuse_norm=fuse_norm,
                          has_bias=has_bias, has_res=has_res, eps=eps),
        out_shape=jax.ShapeDtypeStruct((M, N), x2d.dtype),
        grid_spec=pltpu.PrefetchScalarGridSpec(
            num_scalar_prefetch=0,
            grid=(M // tm, N // tn),
            in_specs=in_specs,
            out_specs=pl.BlockSpec((tm, tn), lambda i, n: (i, n)),
        ),
        compiler_params=pltpu.CompilerParams(
            dimension_semantics=("parallel", "parallel"),
            vmem_limit_bytes=_VMEM_LIMIT,
        ),
        cost_estimate=pl.CostEstimate(
            flops=int(flops),
            transcendentals=int(M if fuse_norm else 0),
            bytes_accessed=int(bytes_accessed)),
    )(*args)


# ----------------------------------------------------------------------------
# Fused MLP kernel: residual + down( silu(gate(RMSNorm(x))) * up(RMSNorm(x)) )
# ----------------------------------------------------------------------------
def _qwen2_mlp_kernel(x_ref, lnw_ref, wg_ref, wu_ref, wd_ref, o_ref,
                      xn_ref, acc_ref, *, eps):
    j = pl.program_id(1)

    @pl.when(j == 0)
    def _():
        # RMSNorm computed once per token tile, stashed in VMEM scratch.
        xf = x_ref[...].astype(jnp.float32)
        var = jnp.mean(xf * xf, axis=-1, keepdims=True)
        xn_ref[...] = (xf * jax.lax.rsqrt(var + eps)).astype(xn_ref.dtype) * lnw_ref[...]

    x = xn_ref[...]                                                       # (tm, H) bf16
    g = jnp.dot(x, wg_ref[...], preferred_element_type=jnp.float32)       # (tm, ti) f32
    u = jnp.dot(x, wu_ref[...], preferred_element_type=jnp.float32).astype(x.dtype)
    h = (g * jax.nn.sigmoid(g)).astype(x.dtype) * u                       # bf16 (torch path)
    part = jnp.dot(h, wd_ref[...], preferred_element_type=jnp.float32)    # (tm, H) f32

    @pl.when(j == 0)
    def _():
        acc_ref[...] = part                     # direct store on first reduction step

    @pl.when(j > 0)
    def _():
        acc_ref[...] += part

    @pl.when(j == pl.num_programs(1) - 1)
    def _():
        o_ref[...] = x_ref[...] + acc_ref[...].astype(o_ref.dtype)        # fused residual


def qwen2_mlp(x2d, ln_w, w_gate_t, w_up_t, w_down_t, *, eps, tm=None, ti=None):
    M, H = x2d.shape
    I = w_gate_t.shape[1]
    tm_auto, ti_auto = _pick_mlp_tiles(M, H, I)
    tm = tm or tm_auto
    ti = ti or ti_auto
    assert M % tm == 0 and I % ti == 0

    flops = 6 * M * H * I
    bytes_accessed = 3 * H * I * 2 + 3 * M * H * 2

    # NOTE: on v5e, if decode profiling shows exposed weight DMA, add
    # pipeline_mode=pl.Buffered(3) to the three weight BlockSpecs below.
    return pl.pallas_call(
        functools.partial(_qwen2_mlp_kernel, eps=eps),
        out_shape=jax.ShapeDtypeStruct((M, H), x2d.dtype),
        grid_spec=pltpu.PrefetchScalarGridSpec(
            num_scalar_prefetch=0,
            grid=(M // tm, I // ti),
            in_specs=[
                pl.BlockSpec((tm, H), lambda i, j: (i, 0)),   # raw x (norm input + residual)
                pl.BlockSpec((1, H), lambda i, j: (0, 0)),    # post-attn LN weight
                pl.BlockSpec((H, ti), lambda i, j: (0, j)),   # gate weight (H, I)
                pl.BlockSpec((H, ti), lambda i, j: (0, j)),   # up weight   (H, I)
                pl.BlockSpec((ti, H), lambda i, j: (j, 0)),   # down weight (I, H)
            ],
            out_specs=pl.BlockSpec((tm, H), lambda i, j: (i, 0)),
            scratch_shapes=[
                pltpu.VMEM((tm, H), x2d.dtype),     # normalized x (bf16)
                pltpu.VMEM((tm, H), jnp.float32),   # down-proj accumulator
            ],
        ),
        compiler_params=pltpu.CompilerParams(
            dimension_semantics=("parallel", "arbitrary"),
            vmem_limit_bytes=_VMEM_LIMIT,
        ),
        cost_estimate=pl.CostEstimate(
            flops=int(flops), transcendentals=int(M * I),
            bytes_accessed=int(bytes_accessed)),
    )(x2d, ln_w.reshape(1, H), w_gate_t, w_up_t, w_down_t)


# ----------------------------------------------------------------------------
# Causal flash attention with GQA-aware K/V blocking and causal block skipping.
# Grid: (batch, kv_heads, q tiles, kv tiles).  One K/V tile serves all n_rep
# query heads of its group.  Softmax scale is pre-folded into q.
# ----------------------------------------------------------------------------
def _flash_attn_kernel(q_ref, k_ref, v_ref, o_ref, m_ref, l_ref, acc_ref,
                       *, tq, tk, n_rep, causal):
    i = pl.program_id(2)
    j = pl.program_id(3)
    nj = pl.num_programs(3)
    D = q_ref.shape[-1]

    @pl.when(j == 0)
    def _():
        m_ref[...] = jnp.full_like(m_ref, -jnp.inf)
        l_ref[...] = jnp.zeros_like(l_ref)
        acc_ref[...] = jnp.zeros_like(acc_ref)

    if causal:
        j_last = jnp.minimum(((i + 1) * tq - 1) // tk, nj - 1)
    else:
        j_last = nj - 1

    @pl.when(j <= j_last)                    # skip fully-masked upper-triangle blocks
    def _():
        q = q_ref[...].reshape(n_rep * tq, D)      # scale already folded into q
        k = k_ref[...].reshape(tk, D)
        v = v_ref[...].reshape(tk, D)
        s = jax.lax.dot_general(q, k, (((1,), (1,)), ((), ())),
                                preferred_element_type=jnp.float32)   # (n_rep*tq, tk)
        if causal:
            rows = jax.lax.broadcasted_iota(jnp.int32, (n_rep * tq, tk), 0)
            cols = jax.lax.broadcasted_iota(jnp.int32, (n_rep * tq, tk), 1)
            qpos = i * tq + jax.lax.rem(rows, jnp.int32(tq))
            kpos = j * tk + cols
            s = jnp.where(qpos >= kpos, s, -1e30)
        m_prev = m_ref[...]
        m_new = jnp.maximum(m_prev, s.max(axis=-1, keepdims=True))
        alpha = jnp.exp(m_prev - m_new)
        p = jnp.exp(s - m_new)
        l_ref[...] = alpha * l_ref[...] + p.sum(axis=-1, keepdims=True)
        acc_ref[...] = alpha * acc_ref[...] + jnp.dot(
            p.astype(v.dtype), v, preferred_element_type=jnp.float32)
        m_ref[...] = m_new

    @pl.when(j == j_last)
    def _():
        out = acc_ref[...] / l_ref[...]            # exact normalization (parity with ref)
        o_ref[...] = out.astype(o_ref.dtype).reshape(o_ref.shape)


def flash_attention(q, k, v, *, causal=True, tq=None, tk=None):
    B, Hq, S, D = q.shape
    _, Hkv, Sk, _ = k.shape
    assert Hq % Hkv == 0
    n_rep = Hq // Hkv
    tq = tq or _largest_divisor_leq(S, 256, prefer=(128, 8))
    tk = tk or _largest_divisor_leq(Sk, 256, prefer=(128, 8))

    def q_map(b, h, i, j):
        return (b, h, i, 0)

    if causal:
        def kv_map(b, h, i, j):
            # Clamp fully-masked blocks to the diagonal block index: the revisit
            # (same block index as the previous step) makes their DMA a no-op.
            return (b, h, jnp.minimum(j, ((i + 1) * tq - 1) // tk), 0)
    else:
        def kv_map(b, h, i, j):
            return (b, h, j, 0)

    flops = 4 * B * Hq * S * Sk * D
    trans = B * Hq * S * Sk
    if causal:
        flops //= 2
        trans //= 2
    bytes_accessed = 2 * (2 * B * Hq * S * D + 2 * B * Hkv * Sk * D)

    return pl.pallas_call(
        functools.partial(_flash_attn_kernel, tq=tq, tk=tk, n_rep=n_rep, causal=causal),
        out_shape=jax.ShapeDtypeStruct((B, Hq, S, D), q.dtype),
        grid_spec=pltpu.PrefetchScalarGridSpec(
            num_scalar_prefetch=0,
            grid=(B, Hkv, S // tq, Sk // tk),
            in_specs=[
                pl.BlockSpec((1, n_rep, tq, D), q_map),   # all n_rep q heads of the group
                pl.BlockSpec((1, 1, tk, D), kv_map),
                pl.BlockSpec((1, 1, tk, D), kv_map),
            ],
            out_specs=pl.BlockSpec((1, n_rep, tq, D), q_map),
            scratch_shapes=[
                pltpu.VMEM((n_rep * tq, 1), jnp.float32),
                pltpu.VMEM((n_rep * tq, 1), jnp.float32),
                pltpu.VMEM((n_rep * tq, D), jnp.float32),
            ],
        ),
        compiler_params=pltpu.CompilerParams(
            dimension_semantics=("parallel", "parallel", "parallel", "arbitrary"),
            vmem_limit_bytes=_VMEM_LIMIT,
        ),
        cost_estimate=pl.CostEstimate(
            flops=int(flops), transcendentals=int(trans),
            bytes_accessed=int(bytes_accessed)),
    )(q, k, v)


# ----------------------------------------------------------------------------
# RoPE (plain JAX), parameter preparation, and the full decoder layer
# ----------------------------------------------------------------------------
def _rotate_half(x):
    half = x.shape[-1] // 2
    return jnp.concatenate([-x[..., half:], x[..., :half]], axis=-1)


def apply_rope(q, k, cos, sin, q_scale=1.0):
    # cos/sin: (1, S, D) -> (1, 1, S, D); RoPE in f32, softmax scale folded into q.
    cos = cos[:, None, :, :].astype(jnp.float32)
    sin = sin[:, None, :, :].astype(jnp.float32)
    qf = q.astype(jnp.float32)
    kf = k.astype(jnp.float32)
    q_out = (qf * cos + _rotate_half(qf) * sin) * q_scale
    k_out = kf * cos + _rotate_half(kf) * sin
    return q_out.astype(q.dtype), k_out.astype(k.dtype)


def prepare_qwen2_layer_params(params):
    """Hoist the per-call QKV weight/bias concat out of the layer (do once at load)."""
    p = dict(params)
    p["wqkv_t"] = jnp.concatenate([params["wq_t"], params["wk_t"], params["wv_t"]], axis=1)
    p["bqkv"] = jnp.concatenate([params["bq"], params["bk"], params["bv"]], axis=0)
    return p


def qwen2_decoder_layer(x, params, cos, sin, *, num_heads, num_kv_heads, head_dim, eps):
    B, S, H = x.shape
    M = B * S
    x2d = x.reshape(M, H)

    # --- self-attention block (input RMSNorm fused into the QKV projection) ---
    wqkv_t = params.get("wqkv_t")
    if wqkv_t is None:
        wqkv_t = jnp.concatenate([params["wq_t"], params["wk_t"], params["wv_t"]], axis=1)
        bqkv = jnp.concatenate([params["bq"], params["bk"], params["bv"]], axis=0)
    else:
        bqkv = params["bqkv"]

    qkv = fused_linear(x2d, wqkv_t, ln_w=params["ln1_w"], bias=bqkv, eps=eps)

    nq = num_heads * head_dim
    nkv = num_kv_heads * head_dim
    q = qkv[:, :nq].reshape(B, S, num_heads, head_dim).transpose(0, 2, 1, 3)
    k = qkv[:, nq:nq + nkv].reshape(B, S, num_kv_heads, head_dim).transpose(0, 2, 1, 3)
    v = qkv[:, nq + nkv:].reshape(B, S, num_kv_heads, head_dim).transpose(0, 2, 1, 3)

    # TODO(synk): RoPE + q/k/v transposes stay in XLA; KV-cache (offset query
    # positions) not implemented.
    q, k = apply_rope(q, k, cos, sin, q_scale=head_dim ** -0.5)

    attn = flash_attention(q, k, v, causal=True)
    attn2d = attn.transpose(0, 2, 1, 3).reshape(M, nq)
    h2d = fused_linear(attn2d, params["wo_t"], residual=x2d)     # o_proj + residual add

    # --- MLP block (post-attention RMSNorm + residual fused into the MLP kernel) ---
    out2d = qwen2_mlp(h2d, params["ln2_w"], params["wg_t"], params["wu_t"],
                      params["wd_t"], eps=eps)
    return out2d.reshape(B, S, H)


# ----------------------------------------------------------------------------
# Pure-JAX reference (mirrors the PyTorch module semantics)
# ----------------------------------------------------------------------------
def reference_decoder_layer(x, params, cos, sin, *, num_heads, num_kv_heads, head_dim, eps):
    f32 = jnp.float32
    B, S, H = x.shape

    def rms(h, w):
        hf = h.astype(f32)
        var = jnp.mean(hf * hf, axis=-1, keepdims=True)
        hn = hf * jax.lax.rsqrt(var + eps)
        return w * hn.astype(h.dtype)

    def lin(h, w_t, b=None):
        y = h.astype(f32) @ w_t.astype(f32)
        if b is not None:
            y = y + b.astype(f32)
        return y.astype(h.dtype)

    def rope_bf16(q, k):
        c = cos[:, None, :, :]
        s = sin[:, None, :, :]
        q_out = q * c + _rotate_half(q) * s
        k_out = k * c + _rotate_half(k) * s
        return q_out.astype(q.dtype), k_out.astype(k.dtype)

    residual = x
    hn = rms(x, params["ln1_w"])
    q = lin(hn, params["wq_t"], params["bq"]).reshape(B, S, num_heads, head_dim).transpose(0, 2, 1, 3)
    k = lin(hn, params["wk_t"], params["bk"]).reshape(B, S, num_kv_heads, head_dim).transpose(0, 2, 1, 3)
    v = lin(hn, params["wv_t"], params["bv"]).reshape(B, S, num_kv_heads, head_dim).transpose(0, 2, 1, 3)
    q, k = rope_bf16(q, k)

    n_rep = num_heads // num_kv_heads
    k = jnp.repeat(k, n_rep, axis=1)
    v = jnp.repeat(v, n_rep, axis=1)
    scores = jnp.einsum("bhqd,bhkd->bhqk", q.astype(f32), k.astype(f32)) * (head_dim ** -0.5)
    causal = jnp.tril(jnp.ones((S, S), dtype=bool))
    scores = jnp.where(causal[None, None], scores, -1e30)
    probs = jax.nn.softmax(scores, axis=-1).astype(x.dtype)
    attn = jnp.einsum("bhqk,bhkd->bhqd", probs.astype(f32), v.astype(f32)).astype(x.dtype)
    attn = attn.transpose(0, 2, 1, 3).reshape(B, S, num_heads * head_dim)
    h = residual + lin(attn, params["wo_t"])

    residual = h
    hn = rms(h, params["ln2_w"])
    g = hn.astype(f32) @ params["wg_t"].astype(f32)
    u = (hn.astype(f32) @ params["wu_t"].astype(f32)).astype(x.dtype)
    act = (g * jax.nn.sigmoid(g)).astype(x.dtype) * u
    mlp = (act.astype(f32) @ params["wd_t"].astype(f32)).astype(x.dtype)
    return residual + mlp


# ----------------------------------------------------------------------------
# Self-contained test
# ----------------------------------------------------------------------------
if __name__ == "__main__":
    batch, seq = 2, 8
    hidden_size = 128
    intermediate_size = 256
    num_heads = 4
    num_kv_heads = 2
    head_dim = hidden_size // num_heads     # 32
    eps = 1e-6
    rope_theta = 10000.0
    dt = jnp.bfloat16

    key = jax.random.PRNGKey(0)
    keys = jax.random.split(key, 12)

    def mk_w(k, shape, scale=0.02):
        return (scale * jax.random.normal(k, shape, dtype=jnp.float32)).astype(dt)

    x = jax.random.normal(keys[0], (batch, seq, hidden_size), dtype=jnp.float32).astype(dt)

    params = {
        "ln1_w": (1.0 + 0.1 * jax.random.normal(keys[1], (hidden_size,))).astype(dt),
        "ln2_w": (1.0 + 0.1 * jax.random.normal(keys[2], (hidden_size,))).astype(dt),
        # PyTorch nn.Linear keeps (out, in); we store the transpose (in, out).
        "wq_t": mk_w(keys[3], (hidden_size, num_heads * head_dim)),
        "wk_t": mk_w(keys[4], (hidden_size, num_kv_heads * head_dim)),
        "wv_t": mk_w(keys[5], (hidden_size, num_kv_heads * head_dim)),
        "bq": mk_w(keys[6], (num_heads * head_dim,)),
        "bk": mk_w(keys[7], (num_kv_heads * head_dim,)),
        "bv": mk_w(keys[8], (num_kv_heads * head_dim,)),
        "wo_t": mk_w(keys[9], (num_heads * head_dim, hidden_size)),
        "wg_t": mk_w(keys[10], (hidden_size, intermediate_size)),
        "wu_t": mk_w(keys[11], (hidden_size, intermediate_size)),
        "wd_t": mk_w(jax.random.fold_in(key, 99), (intermediate_size, hidden_size)),
    }
    prepared = prepare_qwen2_layer_params(params)   # hoisted QKV weight/bias concat

    # Rotary embeddings: (1, S, head_dim)
    inv_freq = 1.0 / (rope_theta ** (jnp.arange(0, head_dim, 2, dtype=jnp.float32) / head_dim))
    pos = jnp.arange(seq, dtype=jnp.float32)
    freqs = pos[:, None] * inv_freq[None, :]
    emb = jnp.concatenate([freqs, freqs], axis=-1)
    cos = jnp.cos(emb)[None].astype(dt)
    sin = jnp.sin(emb)[None].astype(dt)

    out = qwen2_decoder_layer(
        x, prepared, cos, sin,
        num_heads=num_heads, num_kv_heads=num_kv_heads, head_dim=head_dim, eps=eps)
    out = jax.block_until_ready(out)

    ref = reference_decoder_layer(
        x, params, cos, sin,
        num_heads=num_heads, num_kv_heads=num_kv_heads, head_dim=head_dim, eps=eps)

    assert out.shape == (batch, seq, hidden_size)
    assert out.dtype == dt
    o32 = out.astype(jnp.float32)
    r32 = ref.astype(jnp.float32)
    max_diff = float(jnp.max(jnp.abs(o32 - r32)))
    assert jnp.allclose(o32, r32, atol=3e-2, rtol=3e-2), f"max abs diff={max_diff}"

    print("KERNEL_OK")
</pallas_src>

<mosaic_0001>
module attributes {stable_mosaic.version = 11 : i64} {
  func.func @_fused_linear_kernel(%arg0: i32, %arg1: i32, %arg2: memref<16x128xbf16, #tpu.memory_space<vmem>>, %arg3: memref<1x128xbf16, #tpu.memory_space<vmem>>, %arg4: memref<128x256xbf16, #tpu.memory_space<vmem>>, %arg5: memref<1x256xbf16, #tpu.memory_space<vmem>>, %arg6: memref<16x256xbf16, #tpu.memory_space<vmem>>) attributes {dimension_semantics = [#tpu.dimension_semantics<parallel>, #tpu.dimension_semantics<parallel>], iteration_bounds = array<i64: 1, 1>, scalar_prefetch = 0 : i64, scratch_operands = 0 : i64, tpu.core_type = #tpu.core_type<tc>, window_params = [{transform_indices = @transform_0, window_bounds = array<i64: 16, 128>}, {pipeline_mode = #tpu.pipeline_mode<synchronous>, transform_indices = @transform_1, window_bounds = array<i64: 1, 128>}, {transform_indices = @transform_2, window_bounds = array<i64: 128, 256>}, {transform_indices = @transform_3, window_bounds = array<i64: 1, 256>}, {transform_indices = @transform_4, window_bounds = array<i64: 16, 256>}]} {
    %c0 = arith.constant 0 : index
    %c0_0 = arith.constant 0 : index
    %0 = vector.load %arg2[%c0, %c0_0] : memref<16x128xbf16, #tpu.memory_space<vmem>>, vector<16x128xbf16>
    %1 = arith.extf %0 : vector<16x128xbf16> to vector<16x128xf32>
    %2 = arith.mulf %1, %1 : vector<16x128xf32>
    %cst = arith.constant dense<0.000000e+00> : vector<16xf32>
    %3 = vector.multi_reduction <add>, %2, %cst [1] : vector<16x128xf32> to vector<16xf32>
    %4 = vector.shape_cast %3 : vector<16xf32> to vector<16x1xf32>
    %cst_1 = arith.constant 1.280000e+02 : f32
    %5 = vector.broadcast %cst_1 : f32 to vector<16x1xf32>
    %6 = arith.divf %4, %5 : vector<16x1xf32>
    %cst_2 = arith.constant 9.99999997E-7 : f32
    %7 = vector.broadcast %cst_2 : f32 to vector<16x1xf32>
    %8 = arith.addf %6, %7 : vector<16x1xf32>
    %9 = math.rsqrt %8 : vector<16x1xf32>
    %10 = vector.broadcast %9 : vector<16x1xf32> to vector<16x128xf32>
    %11 = arith.mulf %1, %10 : vector<16x128xf32>
    %12 = arith.truncf %11 : vector<16x128xf32> to vector<16x128xbf16>
    %c0_3 = arith.constant 0 : index
    %c0_4 = arith.constant 0 : index
    %13 = vector.load %arg3[%c0_3, %c0_4] : memref<1x128xbf16, #tpu.memory_space<vmem>>, vector<1x128xbf16>
    %14 = vector.broadcast %13 : vector<1x128xbf16> to vector<16x128xbf16>
    %15 = arith.mulf %12, %14 : vector<16x128xbf16>
    %c0_5 = arith.constant 0 : index
    %c0_6 = arith.constant 0 : index
    %16 = vector.load %arg4[%c0_5, %c0_6] : memref<128x256xbf16, #tpu.memory_space<vmem>>, vector<128x256xbf16>
    %cst_7 = arith.constant dense<0.000000e+00> : vector<16x256xf32>
    %17 = tpu.matmul %15, %16, %cst_7 {dimension_numbers = #tpu.dot_dimension_numbers<[1], [0], [0], [1], [0, 0, 1, 1], [], []>} : vector<16x128xbf16>, vector<128x256xbf16>, vector<16x256xf32> -> vector<16x256xf32>
    %c0_8 = arith.constant 0 : index
    %c0_9 = arith.constant 0 : index
    %18 = vector.load %arg5[%c0_8, %c0_9] : memref<1x256xbf16, #tpu.memory_space<vmem>>, vector<1x256xbf16>
    %19 = arith.extf %18 : vector<1x256xbf16> to vector<1x256xf32>
    %20 = vector.broadcast %19 : vector<1x256xf32> to vector<16x256xf32>
    %21 = arith.addf %17, %20 : vector<16x256xf32>
    %22 = arith.truncf %21 : vector<16x256xf32> to vector<16x256xbf16>
    %c0_10 = arith.constant 0 : index
    %c0_11 = arith.constant 0 : index
    %23 = vector.load %arg6[%c0_10, %c0_11] : memref<16x256xbf16, #tpu.memory_space<vmem>>, vector<16x256xbf16>
    tpu.vector_store %arg6[%c0_10, %c0_11], %22 {strides = array<i32>} : memref<16x256xbf16, #tpu.memory_space<vmem>>, vector<16x256xbf16>,
    return
  }
  func.func @transform_0(%arg0: i32, %arg1: i32) -> (i32, i32) {
    %c0_i32 = arith.constant 0 : i32
    %c0_i32_0 = arith.constant 0 : i32
    return %arg0, %c0_i32 : i32, i32
  }
  func.func @transform_1(%arg0: i32, %arg1: i32) -> (i32, i32) {
    %c0_i32 = arith.constant 0 : i32
    %c0_i32_0 = arith.constant 0 : i32
    %c0_i32_1 = arith.constant 0 : i32
    return %c0_i32, %c0_i32_0 : i32, i32
  }
  func.func @transform_2(%arg0: i32, %arg1: i32) -> (i32, i32) {
    %c0_i32 = arith.constant 0 : i32
    %c0_i32_0 = arith.constant 0 : i32
    return %c0_i32, %arg1 : i32, i32
  }
  func.func @transform_3(%arg0: i32, %arg1: i32) -> (i32, i32) {
    %c0_i32 = arith.constant 0 : i32
    %c0_i32_0 = arith.constant 0 : i32
    return %c0_i32, %arg1 : i32, i32
  }
  func.func @transform_4(%arg0: i32, %arg1: i32) -> (i32, i32) {
    %c0_i32 = arith.constant 0 : i32
    return %arg0, %arg1 : i32, i32
  }
}

</mosaic_0001>

<llo_original>
// kernel: tpu_custom_call.1
$region0: #{tpu_custom_call.1}
  #allocation0 [shape = 'u32[]', space=smem, size = 0x4, offset = 0x4, fixed_abs, tag = 'smem constant byte address 0x4 - core index']
  #allocation1 [shape = 'u32[144,128]{1,0:T(1,128)}', space=vmem, size = 0x12000, scoped, tag = 'internal scratch']
  %s0 = inlined_call_operand.hbm [shape: bf16[16,128], index: 0, kind: input, shape index: {}]
  %s1 = inlined_call_operand.vmem [shape: bf16[1,128], index: 1, kind: input, shape index: {}]
  %s2 = inlined_call_operand.hbm [shape: bf16[128,256], index: 2, kind: input, shape index: {}]
  %s3 = inlined_call_operand.vmem [shape: bf16[1,256], index: 3, kind: input, shape index: {}]
  %s4 = inlined_call_operand.hbm [shape: bf16[16,256], index: 4, kind: output, shape index: {}]
  %s5 = sld [smem:[#allocation0]]
  $region34: #{tpu_custom_call.1} parent=0
    _
  %s7 = ssub.s32 1, %s5
  %s8 = scalar_select 0, %s7, %s5
  $region1: #{tpu_custom_call.1} parent=0
    #allocation2 [shape = 'u8[4096]{0}', space=vmem, size = 0x1000, scoped, tag = 'input window, operand 0, single buffered']
    #allocation3 [shape = 's32[1]{0}', space=sflag, size = 0x4, scoped, tag = 'scoped memory for tpu_custom_call.1']
    #allocation4 [shape = 's32[1]{0}', space=sflag, size = 0x4, scoped, tag = 'scoped memory for tpu_custom_call.1']
    #allocation5 [shape = 'u8[65536]{0}', space=vmem, size = 0x10000, scoped, tag = 'input window, operand 2, single buffered']
    #allocation6 [shape = 's32[1]{0}', space=sflag, size = 0x4, scoped, tag = 'scoped memory for tpu_custom_call.1']
    #allocation7 [shape = 'u8[8192]{0}', space=vmem, size = 0x2000, scoped, tag = 'output window, operand 0, single buffered']
    %9 = vsyncpa [#allocation3], 0
    %10 = vsyncpa [#allocation6], 0
    %11 = vsyncpa [#allocation4], 0
    // Predicated region
    $region2: #{tpu_custom_call.1} parent=1 // pred_check
      _
    $region3: #{tpu_custom_call.1} parent=1 // pred_check_branch
      %13 = sbr.rel (0) target = $region5
    $region4: #{tpu_custom_call.1} parent=1 // pred_region
      %s15 = ssub.s32 128, 128
      %16 = vsyncadd [#allocation3], %s15
      %s17 = sshll.u32 [#allocation2], 4
      %s18 = int_to_ptr.vmem [resolvable:$true] %s17
      %23 = dma.hbm_to_vmem [thread:$0]  %s0, 128, %s18, [#allocation3], 64, 64, 4
    $region5: #{tpu_custom_call.1} parent=1 // pred_fallthru
      _
    // Predicated region
    $region6: #{tpu_custom_call.1} parent=1 // pred_check
      _
    $region7: #{tpu_custom_call.1} parent=1 // pred_check_branch
      %25 = sbr.rel (0) target = $region9
    $region8: #{tpu_custom_call.1} parent=1 // pred_region
      _
    $region9: #{tpu_custom_call.1} parent=1 // pred_fallthru
      _
    // Predicated region
    $region10: #{tpu_custom_call.1} parent=1 // pred_check
      _
    $region11: #{tpu_custom_call.1} parent=1 // pred_check_branch
      %27 = sbr.rel (0) target = $region13
    $region12: #{tpu_custom_call.1} parent=1 // pred_region
      %s29 = ssub.s32 2048, 2048
      %30 = vsyncadd [#allocation6], %s29
      %s31 = sshll.u32 [#allocation5], 4
      %s32 = int_to_ptr.vmem [resolvable:$true] %s31
      %37 = dma.hbm_to_vmem [thread:$0]  %s2, 2048, %s32, [#allocation6], 128, 128, 8
    $region13: #{tpu_custom_call.1} parent=1 // pred_fallthru
      _
    // Predicated region
    $region14: #{tpu_custom_call.1} parent=1 // pred_check
      _
    $region15: #{tpu_custom_call.1} parent=1 // pred_check_branch
      %39 = sbr.rel (0) target = $region17
    $region16: #{tpu_custom_call.1} parent=1 // pred_region
      _
    $region17: #{tpu_custom_call.1} parent=1 // pred_fallthru
      _
    // Predicated region
    $region18: #{tpu_custom_call.1} parent=1 // pred_check
      _
    $region19: #{tpu_custom_call.1} parent=1 // pred_check_branch
      %41 = sbr.rel (0) target = $region21
    $region20: #{tpu_custom_call.1} parent=1 // pred_region
      %42 = dma.done [#allocation3], 128
    $region21: #{tpu_custom_call.1} parent=1 // pred_fallthru
      _
    // Predicated region
    $region22: #{tpu_custom_call.1} parent=1 // pred_check
      _
    $region23: #{tpu_custom_call.1} parent=1 // pred_check_branch
      %44 = sbr.rel (0) target = $region25
    $region24: #{tpu_custom_call.1} parent=1 // pred_region
      %45 = dma.done [#allocation6], 2048
    $region25: #{tpu_custom_call.1} parent=1 // pred_fallthru
      _
    %v47 = vld [vmem:[#allocation2] sm:$0xf]
    %v48 = vld [vmem:[#allocation2 + $0x4] sm:$0xf]
    %v49 = vunpack.c.l.bf16 %v47
    %v50 = vunpack.c.l.bf16 %v48
    %v51 = vmul.f32 %v49, %v49
    %v52 = vmul.f32 %v50, %v50
    %53 = vadd.xlane.f32.xlu0 %v51
    %v54 = vpop.xlane.xlu0 %53
    %55 = vadd.xlane.f32.xlu0 %v52
    %v56 = vpop.xlane.xlu0 %55
    %v57 = vrcp.pop 128.0
    %v58 = vmul.f32 %v54, %v57
    %v59 = vmul.f32 %v56, %v57
    %v60 = vadd.f32 %v58, 1e-06
    %v61 = vadd.f32 %v59, 1e-06
    %v62 = vrsqrt.pop %v60
    %v63 = vrsqrt.pop %v61
    %v64 = vmul.f32 %v49, %v62
    %v65 = vmul.f32 %v50, %v63
    %v66 = vpack.c.bf16 %v65, %v64
    %v67 = vld [vmem:[%s1] sm:$0x1]
    %v69 = vpack.i.b16 %v67, %v67
    %v71 = vlaneseq
    %v72 = vshrl.u32 %v71, 7
    %v73 = vsub.s32 0, %v72
    %v74 = vrot.slane %v69, %v73
    %v75 = vmul.bf16 %v66, %v74
    %v76 = vld [vmem:[#allocation5] sm:$0xff]
    %v77 = vld [vmem:[#allocation5 + $0x8] sm:$0xff]
    %v78 = vld [vmem:[#allocation5 + $0x10] sm:$0xff]
    %v79 = vld [vmem:[#allocation5 + $0x18] sm:$0xff]
    %v80 = vld [vmem:[#allocation5 + $0x20] sm:$0xff]
    %v81 = vld [vmem:[#allocation5 + $0x28] sm:$0xff]
    %v82 = vld [vmem:[#allocation5 + $0x30] sm:$0xff]
    %v83 = vld [vmem:[#allocation5 + $0x38] sm:$0xff]
    %v84 = vld [vmem:[#allocation5 + $0x40] sm:$0xff]
    %v85 = vld [vmem:[#allocation5 + $0x48] sm:$0xff]
    %v86 = vld [vmem:[#allocation5 + $0x50] sm:$0xff]
    %v87 = vld [vmem:[#allocation5 + $0x58] sm:$0xff]
    %v88 = vld [vmem:[#allocation5 + $0x60] sm:$0xff]
    %v89 = vld [vmem:[#allocation5 + $0x68] sm:$0xff]
    %v90 = vld [vmem:[#allocation5 + $0x70] sm:$0xff]
    %v91 = vld [vmem:[#allocation5 + $0x78] sm:$0xff]
    %v92 = vld [vmem:[%s3] sm:$0x3]
    %v93 = vunpack.c.l.bf16 %v92
    %v95 = vlaneseq
    %v96 = vshrl.u32 %v95, 7
    %v97 = vsub.s32 0, %v96
    %v98 = vrot.slane %v93, %v97
    %v99 = vlaneseq
    %v100 = vshrl.u32 %v99, 7
    %v101 = vsub.s32 2, %v100
    %v102 = vrot.slane %v93, %v101
    %v105 = vlaneseq
    %v106 = vshrl.u32 %v105, 7
    %v107 = vsub.s32 0, %v106
    %v108 = vrot.slane %v98, %v107
    %v109 = vlaneseq
    %v110 = vshrl.u32 %v109, 7
    %v111 = vsub.s32 0, %v110
    %v112 = vrot.slane %v102, %v111
    %v129 = vunpack.c.l.b16 %v76
    %v130 = vunpack.c.h.b16 %v76
    %v131 = vunpack.c.l.b16 %v77
    %v132 = vunpack.c.h.b16 %v77
    %v133 = vunpack.c.l.b16 %v78
    %v134 = vunpack.c.h.b16 %v78
    %v135 = vunpack.c.l.b16 %v79
    %v136 = vunpack.c.h.b16 %v79
    %v137 = vunpack.c.l.b16 %v80
    %v138 = vunpack.c.h.b16 %v80
    %v139 = vunpack.c.l.b16 %v81
    %v140 = vunpack.c.h.b16 %v81
    %v141 = vunpack.c.l.b16 %v82
    %v142 = vunpack.c.h.b16 %v82
    %v143 = vunpack.c.l.b16 %v83
    %v144 = vunpack.c.h.b16 %v83
    %v145 = vunpack.c.l.b16 %v84
    %v146 = vunpack.c.h.b16 %v84
    %v147 = vunpack.c.l.b16 %v85
    %v148 = vunpack.c.h.b16 %v85
    %v149 = vunpack.c.l.b16 %v86
    %v150 = vunpack.c.h.b16 %v86
    %v151 = vunpack.c.l.b16 %v87
    %v152 = vunpack.c.h.b16 %v87
    %v153 = vunpack.c.l.b16 %v88
    %v154 = vunpack.c.h.b16 %v88
    %v155 = vunpack.c.l.b16 %v89
    %v156 = vunpack.c.h.b16 %v89
    %v157 = vunpack.c.l.b16 %v90
    %v158 = vunpack.c.h.b16 %v90
    %v159 = vunpack.c.l.b16 %v91
    %v160 = vunpack.c.h.b16 %v91
    %v161 = vpack.c.b16 %v131, %v129
    %v162 = vpack.c.b16 %v132, %v130
    %v163 = vpack.c.b16 %v135, %v133
    %v164 = vpack.c.b16 %v136, %v134
    %v165 = vpack.c.b16 %v139, %v137
    %v166 = vpack.c.b16 %v140, %v138
    %v167 = vpack.c.b16 %v143, %v141
    %v168 = vpack.c.b16 %v144, %v142
    %v169 = vpack.c.b16 %v147, %v145
    %v170 = vpack.c.b16 %v148, %v146
    %v171 = vpack.c.b16 %v151, %v149
    %v172 = vpack.c.b16 %v152, %v150
    %v173 = vpack.c.b16 %v155, %v153
    %v174 = vpack.c.b16 %v156, %v154
    %v175 = vpack.c.b16 %v159, %v157
    %v176 = vpack.c.b16 %v160, %v158
    %193 = vmatprep.subr.bf16.mxu0 %v162
    %194 = vmatpush1.bf16.msra.mxu0 %v161
    %195 = vmatprep.subr.bf16.mxu0 %v164
    %196 = vmatpush1.bf16.msra.mxu0 %v163
    %197 = vmatprep.subr.bf16.mxu0 %v166
    %198 = vmatpush1.bf16.msra.mxu0 %v165
    %199 = vmatprep.subr.bf16.mxu0 %v168
    %200 = vmatpush1.bf16.msra.mxu0 %v167
    %201 = vmatprep.subr.bf16.mxu0 %v170
    %202 = vmatpush1.bf16.msra.mxu0 %v169
    %203 = vmatprep.subr.bf16.mxu0 %v172
    %204 = vmatpush1.bf16.msra.mxu0 %v171
    %205 = vmatprep.subr.bf16.mxu0 %v174
    %206 = vmatpush1.bf16.msra.mxu0 %v173
    %207 = vmatprep.subr.bf16.mxu0 %v176
    %208 = vmatpush1.bf16.msra.mxu0 %v175
    %209 = vmatprep.subr.bf16.mxu0 0
    %210 = vmatpush1.bf16.msra.mxu0 0
    %211 = vmatprep.subr.bf16.mxu0 0
    %212 = vmatpush1.bf16.msra.mxu0 0
    %213 = vmatprep.subr.bf16.mxu0 0
    %214 = vmatpush1.bf16.msra.mxu0 0
    %215 = vmatprep.subr.bf16.mxu0 0
    %216 = vmatpush1.bf16.msra.mxu0 0
    %217 = vmatprep.subr.bf16.mxu0 0
    %218 = vmatpush1.bf16.msra.mxu0 0
    %219 = vmatprep.subr.bf16.mxu0 0
    %220 = vmatpush1.bf16.msra.mxu0 0
    %221 = vmatprep.subr.bf16.mxu0 0
    %222 = vmatpush1.bf16.msra.mxu0 0
    %223 = vmatprep.subr.bf16.mxu0 0
    %224 = vmatpush1.bf16.msra.mxu0 0
    %225 = vmatprep.mubr.bf16.mxu0 0
    %226 = vmatmul.mubr.bf16.gmra.mrb[0].mxu0 %v75
    %v227 = vpop.f32.mrb[0].mxu0
    %v228 = vadd.f32 %v108, %v227
    %v229 = vpop.f32.mrb[0].mxu0
    %v230 = vadd.f32 %v112, %v229
    %v231 = vpop.f32.mrb[0].mxu0
    %v232 = vadd.f32 %v108, %v231
    %v233 = vpop.f32.mrb[0].mxu0
    %v234 = vadd.f32 %v112, %v233
    %235 = vdwg.mxu0
    %v236 = vpack.c.bf16 %v232, %v228
    %v237 = vpack.c.bf16 %v234, %v230
    %v240 = vunpack.c.l.b16 %v236
    %v241 = vunpack.c.l.b16 %v237
    %v242 = vunpack.c.h.b16 %v236
    %v243 = vunpack.c.h.b16 %v237
    %v244 = vpack.c.b16 %v241, %v240
    %v245 = vpack.c.b16 %v243, %v242
    %248 = vst [vmem:[#allocation7] sm:$0xff] %v244
    %249 = vst [vmem:[#allocation7 + $0x8] sm:$0xff] %v245
    // Predicated region
    $region26: #{tpu_custom_call.1} parent=1 // pred_check
      _
    $region27: #{tpu_custom_call.1} parent=1 // pred_check_branch
      %251 = sbr.rel (0) target = $region29
    $region28: #{tpu_custom_call.1} parent=1 // pred_region
      %s253 = ssub.s32 256, 256
      %254 = vsyncadd [#allocation4], %s253
      %s255 = sshll.u32 [#allocation7], 4
      %s256 = int_to_ptr.vmem [resolvable:$true] %s255
      %261 = dma.vmem_to_hbm [thread:$0]  %s256, 256, %s4, [#allocation4], 128, 128, 8
    $region29: #{tpu_custom_call.1} parent=1 // pred_fallthru
      _
    // Predicated region
    $region30: #{tpu_custom_call.1} parent=1 // pred_check
      _
    $region31: #{tpu_custom_call.1} parent=1 // pred_check_branch
      %263 = sbr.rel (0) target = $region33
    $region32: #{tpu_custom_call.1} parent=1 // pred_region
      %264 = dma.done [#allocation4], 256
    $region33: #{tpu_custom_call.1} parent=1 // pred_fallthru
      _
    %265 = vsyncpa [#allocation3], 1
    %266 = vsyncpa [#allocation6], 1
    %267 = vsyncpa [#allocation4], 1

</llo_original>
